<compile_context>
chip_gen: v5e
topology: v5e:2x2
jax: 0.10.0
libtpu: 0.0.40
codegen_flags: <defaults>
</compile_context>

<pallas_src>
import jax
import jax.numpy as jnp
from jax.experimental import pallas as pl
from jax.experimental.pallas import tpu as pltpu


# ----------------------------- schedule glue ------------------------------ #
def beta_scheduler(num_timesteps: int, beta_start: float = 1e-4,
                   beta_end: float = 0.02) -> jnp.ndarray:
    """Linear beta schedule (deterministic, in-script)."""
    return jnp.linspace(beta_start, beta_end, num_timesteps, dtype=jnp.float32)


def diffusion_coefficients(num_timesteps: int):
    betas = beta_scheduler(num_timesteps)
    alphas = 1.0 - betas
    alphas_cumprod = jnp.cumprod(alphas)
    sqrt_ab = jnp.sqrt(alphas_cumprod)             # [T]
    sqrt_1m_ab = jnp.sqrt(1.0 - alphas_cumprod)    # [T]
    return sqrt_ab, sqrt_1m_ab


def _round_up(x: int, m: int) -> int:
    return ((x + m - 1) // m) * m


def _largest_aligned_divisor(n: int, align: int, cap: int) -> int:
    """Largest multiple of `align` that divides n and is <= cap (n % align == 0)."""
    best = align
    d = align
    limit = min(n, cap)
    while d <= limit:
        if n % d == 0:
            best = d
        d += align
    return best


# ------------------------------ Pallas kernel ------------------------------ #
def _q_sample_kernel(a_ref, s_ref, x_ref, n_ref, o_ref):
    # a_ref / s_ref: (tb, 1) f32 per-row coefficients (VMEM)
    # x_ref / n_ref / o_ref: (tb, tf) VMEM tiles
    a = a_ref[...]                       # (tb, 1) f32
    s = s_ref[...]                       # (tb, 1) f32
    x = x_ref[...].astype(jnp.float32)   # f32 compute (bf16-safe on v5e)
    n = n_ref[...].astype(jnp.float32)
    o_ref[...] = (a * x + s * n).astype(o_ref.dtype)


# Tile caps.  Budget: <= 1M elements per tile (4 MiB in f32).  Six buffers
# (x, noise, out; double-buffered) ~= 24 MiB -> fits v7x's 64 MiB VMEM.
_TB_MAX = 512
_TF_MAX = 4096
_TILE_ELEMS_MAX = 1 << 20
_VMEM_LIMIT_BYTES = 48 * 1024 * 1024


def forward_model_q_sample(x_0: jnp.ndarray, t: jnp.ndarray,
                           noise: jnp.ndarray,
                           num_timesteps: int = 1000) -> jnp.ndarray:
    """x_t = sqrt(ab[t]) * x_0 + sqrt(1-ab[t]) * noise   (same shape as x_0)."""
    assert x_0.shape == noise.shape
    B, C, H, W = x_0.shape
    F = C * H * W

    # --- tiny glue: per-batch coefficient gather (plain JAX, negligible) ---
    sqrt_ab_all, sqrt_1m_ab_all = diffusion_coefficients(num_timesteps)
    a_t = sqrt_ab_all[t].astype(jnp.float32)        # [B]
    s_t = sqrt_1m_ab_all[t].astype(jnp.float32)     # [B]
    # TODO(synk): could fold this gather + noise RNG (pltpu.prng_random_bits)
    # into the kernel to save an HBM stream; kept out to preserve the exact
    # "noise is an input" q-sample semantics.

    # --- lane tile (tf): divisor of F when 128-aligned, else full extent ----
    if F % 128 == 0:
        tf = _largest_aligned_divisor(F, 128, _TF_MAX)
        F_pad = F
    elif F * 8 <= _TILE_ELEMS_MAX:
        tf = F                    # full-extent row: zero-copy, masked edge ok
        F_pad = F
    else:
        F_pad = _round_up(F, 128)                   # pad lanes only to 128
        tf = _largest_aligned_divisor(F_pad, 128, _TF_MAX)

    # --- row tile (tb): divisor of B when 8-aligned, else full extent -------
    tb_cap = max(8, min(_TB_MAX, (_TILE_ELEMS_MAX // tf) // 8 * 8))
    if B % 8 == 0:
        tb = _largest_aligned_divisor(B, 8, tb_cap)
        B_pad = B
    elif B <= tb_cap:
        tb = B                    # full-extent batch: no pad / slice copies
        B_pad = B
    else:
        B_pad = _round_up(B, 8)
        tb = _largest_aligned_divisor(B_pad, 8, tb_cap)

    # Feed both TensorCores on v7x when the grid would otherwise be (1, 1).
    if B_pad // tb == 1 and F_pad // tf == 1 and tf % 256 == 0:
        tf //= 2

    # --- layout (only materialize padded copies when unavoidable) ----------
    x2d = x_0.reshape(B, F)
    n2d = noise.reshape(B, F)
    needs_pad = (B_pad != B) or (F_pad != F)
    if needs_pad:
        x2d = jnp.pad(x2d, ((0, B_pad - B), (0, F_pad - F)))
        n2d = jnp.pad(n2d, ((0, B_pad - B), (0, F_pad - F)))
        a2d = jnp.pad(a_t, (0, B_pad - B)).reshape(B_pad, 1)
        s2d = jnp.pad(s_t, (0, B_pad - B)).reshape(B_pad, 1)
    else:
        a2d = a_t.reshape(B, 1)
        s2d = s_t.reshape(B, 1)

    grid = (B_pad // tb, F_pad // tf)   # F innermost: coeff tiles not re-DMA'd

    out2d = pl.pallas_call(
        _q_sample_kernel,
        out_shape=jax.ShapeDtypeStruct((B_pad, F_pad), x_0.dtype),
        grid=grid,
        in_specs=[
            pl.BlockSpec((tb, 1), lambda i, j: (i, 0)),     # sqrt(ab[t])
            pl.BlockSpec((tb, 1), lambda i, j: (i, 0)),     # sqrt(1-ab[t])
            pl.BlockSpec((tb, tf), lambda i, j: (i, j)),    # x_0
            pl.BlockSpec((tb, tf), lambda i, j: (i, j)),    # noise
        ],
        out_specs=pl.BlockSpec((tb, tf), lambda i, j: (i, j)),
        compiler_params=pltpu.CompilerParams(
            dimension_semantics=("parallel", "parallel"),
            vmem_limit_bytes=_VMEM_LIMIT_BYTES),
    )(a2d, s2d, x2d, n2d)

    if needs_pad:
        out2d = out2d[:B, :F]
    return out2d.reshape(B, C, H, W)


# TODO(synk): ForwardModel.forward / .step raise NotImplemented in the
# reference template; only the canonical forward q-sample is implemented here.


if __name__ == "__main__":
    key = jax.random.PRNGKey(0)
    k_x, k_noise, k_t = jax.random.split(key, 3)

    B, C, H, W = 2, 4, 16, 16
    T = 1000

    x_0 = jax.random.normal(k_x, (B, C, H, W), dtype=jnp.float32)
    noise = jax.random.normal(k_noise, (B, C, H, W), dtype=jnp.float32)
    t = jax.random.randint(k_t, (B,), 0, T, dtype=jnp.int32)

    x_t = forward_model_q_sample(x_0, t, noise, num_timesteps=T)
    x_t = jax.block_until_ready(x_t)

    # Reference check (pure JAX) for the same semantics.
    sab, s1m = diffusion_coefficients(T)
    ref = (sab[t][:, None, None, None] * x_0
           + s1m[t][:, None, None, None] * noise)
    assert x_t.shape == (B, C, H, W)
    assert jnp.allclose(x_t, ref, atol=1e-6, rtol=1e-6)

    # bf16 I/O path (halves HBM traffic; kernel upcasts to f32 internally).
    x_bf = x_0.astype(jnp.bfloat16)
    n_bf = noise.astype(jnp.bfloat16)
    x_t_bf = jax.block_until_ready(
        forward_model_q_sample(x_bf, t, n_bf, num_timesteps=T))
    assert x_t_bf.dtype == jnp.bfloat16
    assert jnp.allclose(x_t_bf.astype(jnp.float32), ref, atol=2e-2, rtol=2e-2)

    # Ragged-shape path (B not multiple of 8, F not multiple of 128):
    # exercises the zero-copy full-extent block selection.
    Br, Cr, Hr, Wr = 3, 3, 7, 9
    x_r = jax.random.normal(k_x, (Br, Cr, Hr, Wr), dtype=jnp.float32)
    n_r = jax.random.normal(k_noise, (Br, Cr, Hr, Wr), dtype=jnp.float32)
    t_r = jax.random.randint(k_t, (Br,), 0, T, dtype=jnp.int32)
    x_t_r = jax.block_until_ready(
        forward_model_q_sample(x_r, t_r, n_r, num_timesteps=T))
    ref_r = (sab[t_r][:, None, None, None] * x_r
             + s1m[t_r][:, None, None, None] * n_r)
    assert jnp.allclose(x_t_r, ref_r, atol=1e-6, rtol=1e-6)

    print("KERNEL_OK")
</pallas_src>

<mosaic_0001>
module attributes {stable_mosaic.version = 11 : i64} {
  func.func @_q_sample_kernel(%arg0: i32, %arg1: i32, %arg2: memref<2x1xf32, #tpu.memory_space<vmem>>, %arg3: memref<2x1xf32, #tpu.memory_space<vmem>>, %arg4: memref<2x512xf32, #tpu.memory_space<vmem>>, %arg5: memref<2x512xf32, #tpu.memory_space<vmem>>, %arg6: memref<2x512xf32, #tpu.memory_space<vmem>>) attributes {dimension_semantics = [#tpu.dimension_semantics<parallel>, #tpu.dimension_semantics<parallel>], iteration_bounds = array<i64: 1, 2>, scalar_prefetch = 0 : i64, scratch_operands = 0 : i64, tpu.core_type = #tpu.core_type<tc>, window_params = [{transform_indices = @transform_0, window_bounds = array<i64: 2, 1>}, {transform_indices = @transform_1, window_bounds = array<i64: 2, 1>}, {transform_indices = @transform_2, window_bounds = array<i64: 2, 512>}, {transform_indices = @transform_3, window_bounds = array<i64: 2, 512>}, {transform_indices = @transform_4, window_bounds = array<i64: 2, 512>}]} {
    %c0 = arith.constant 0 : index
    %c0_0 = arith.constant 0 : index
    %0 = vector.load %arg2[%c0, %c0_0] : memref<2x1xf32, #tpu.memory_space<vmem>>, vector<2x1xf32>
    %c0_1 = arith.constant 0 : index
    %c0_2 = arith.constant 0 : index
    %1 = vector.load %arg3[%c0_1, %c0_2] : memref<2x1xf32, #tpu.memory_space<vmem>>, vector<2x1xf32>
    %c0_3 = arith.constant 0 : index
    %c0_4 = arith.constant 0 : index
    %2 = vector.load %arg4[%c0_3, %c0_4] : memref<2x512xf32, #tpu.memory_space<vmem>>, vector<2x512xf32>
    %c0_5 = arith.constant 0 : index
    %c0_6 = arith.constant 0 : index
    %3 = vector.load %arg5[%c0_5, %c0_6] : memref<2x512xf32, #tpu.memory_space<vmem>>, vector<2x512xf32>
    %4 = vector.broadcast %0 : vector<2x1xf32> to vector<2x512xf32>
    %5 = arith.mulf %4, %2 : vector<2x512xf32>
    %6 = vector.broadcast %1 : vector<2x1xf32> to vector<2x512xf32>
    %7 = arith.mulf %6, %3 : vector<2x512xf32>
    %8 = arith.addf %5, %7 : vector<2x512xf32>
    %c0_7 = arith.constant 0 : index
    %c0_8 = arith.constant 0 : index
    %9 = vector.load %arg6[%c0_7, %c0_8] : memref<2x512xf32, #tpu.memory_space<vmem>>, vector<2x512xf32>
    tpu.vector_store %arg6[%c0_7, %c0_8], %8 {strides = array<i32>} : memref<2x512xf32, #tpu.memory_space<vmem>>, vector<2x512xf32>,
    return
  }
  func.func @transform_0(%arg0: i32, %arg1: i32) -> (i32, i32) {
    %c0_i32 = arith.constant 0 : i32
    %c0_i32_0 = arith.constant 0 : i32
    return %arg0, %c0_i32 : i32, i32
  }
  func.func @transform_1(%arg0: i32, %arg1: i32) -> (i32, i32) {
    %c0_i32 = arith.constant 0 : i32
    %c0_i32_0 = arith.constant 0 : i32
    return %arg0, %c0_i32 : i32, i32
  }
  func.func @transform_2(%arg0: i32, %arg1: i32) -> (i32, i32) {
    %c0_i32 = arith.constant 0 : i32
    return %arg0, %arg1 : i32, i32
  }
  func.func @transform_3(%arg0: i32, %arg1: i32) -> (i32, i32) {
    %c0_i32 = arith.constant 0 : i32
    return %arg0, %arg1 : i32, i32
  }
  func.func @transform_4(%arg0: i32, %arg1: i32) -> (i32, i32) {
    %c0_i32 = arith.constant 0 : i32
    return %arg0, %arg1 : i32, i32
  }
}

</mosaic_0001>

<llo_original>
// kernel: tpu_custom_call.1
$region0: #{tpu_custom_call.1}
  #allocation0 [shape = 'u32[]', space=smem, size = 0x4, offset = 0x4, fixed_abs, tag = 'smem constant byte address 0x4 - core index']
  #allocation1 [shape = 'u32[72,128]{1,0:T(1,128)}', space=vmem, size = 0x9000, scoped, tag = 'internal scratch']
  %s0 = inlined_call_operand.vmem [shape: f32[2,1], index: 0, kind: input, shape index: {}]
  %s1 = inlined_call_operand.vmem [shape: f32[2,1], index: 1, kind: input, shape index: {}]
  %s2 = inlined_call_operand.hbm [shape: f32[2,1024], index: 2, kind: input, shape index: {}]
  %s3 = inlined_call_operand.hbm [shape: f32[2,1024], index: 3, kind: input, shape index: {}]
  %s4 = inlined_call_operand.hbm [shape: f32[2,1024], index: 4, kind: output, shape index: {}]
  %s5 = sld [smem:[#allocation0]]
  $region57: #{tpu_custom_call.1} parent=0
    _
  %s7 = ssub.s32 1, %s5
  %s8 = scalar_select 0, %s7, %s5
  $region1: #{tpu_custom_call.1} parent=0
    #allocation2 [shape = 'u8[8192]{0}', space=vmem, size = 0x2000, scoped, tag = 'input window, operand 2']
    #allocation3 [shape = 's32[2]{0}', space=sflag, size = 0x8, scoped, tag = 'scoped memory for tpu_custom_call.1']
    #allocation4 [shape = 's32[2]{0}', space=sflag, size = 0x8, scoped, tag = 'scoped memory for tpu_custom_call.1']
    #allocation5 [shape = 'u8[8192]{0}', space=vmem, size = 0x2000, scoped, tag = 'input window, operand 3']
    #allocation6 [shape = 's32[2]{0}', space=sflag, size = 0x8, scoped, tag = 'scoped memory for tpu_custom_call.1']
    #allocation7 [shape = 'u8[8192]{0}', space=vmem, size = 0x2000, scoped, tag = 'output window, operand 0']
    %9 = vsyncpa [#allocation3], 0
    %s10 = scalar_lea.sflag [#allocation3], 1
    %11 = vsyncpa %s10, 0
    %12 = vsyncpa [#allocation6], 0
    %s13 = scalar_lea.sflag [#allocation6], 1
    %14 = vsyncpa %s13, 0
    %15 = vsyncpa [#allocation4], 0
    %s16 = scalar_lea.sflag [#allocation4], 1
    %17 = vsyncpa %s16, 0
    loop: start=0, step=1, limit=4
    $region2: #{tpu_custom_call.1} parent=1 // loop_pre_header
      _
    $region3: #{tpu_custom_call.1} parent=1 // loop_header
      %s19 = sphi 0, %s23
      %p20 = scmp.ge.s32.totalorder %s19, 4
      %s26 = sphi 0, %s38
      %s27 = sphi 0, %s34
      %s28 = sphi 0, %s26
      %s29 = sphi 0, %s27
      %s30 = sphi 0, %s28
      %s31 = sphi 0, %s29
      %s41 = sphi 0, %s43
      %s44 = sphi 0, %s41
      %s45 = sphi 0, %s44
      %s61 = sphi 0, %s45
      %s67 = sphi 0, %s69
      %s70 = sphi 0, %s67
      %s71 = sphi 0, %s70
      %s87 = sphi 0, %s71
      %s95 = sphi 0, %s97
      %s98 = sphi 0, %s95
      %s99 = sphi 0, %s98
      %s115 = sphi 0, %s99
      %s123 = sphi 0, %s125
      %s126 = sphi 0, %s123
      %s127 = sphi 0, %s126
      %s143 = sphi 0, %s127
      %s151 = sphi 0, %s153
      %s154 = sphi 0, %s151
      %s155 = sphi 0, %s154
      %s171 = sphi 0, %s155
    $region4: #{tpu_custom_call.1} parent=1 // loop_header_branch
      %22 = sbr.rel (%p20) target = $region8
    $region5: #{tpu_custom_call.1} parent=1 // loop_body
      %s24 = ssub.s32 %s19, 1
      %s25 = ssub.s32 %s19, 2
      %s32 = sadd.s32 1, %s27
      %p33 = scmp.ge.s32.totalorder %s32, 2
      %s34 = scalar_select %p33, 0, %s32
      %s35 = sadd.s32 1, %s26
      %s36 = scalar_select %p33, %s35, %s26
      %p37 = scmp.ge.s32.totalorder %s36, 1
      %s38 = scalar_select %p37, 0, %s36
      %s39 = ssub.s32 %s26, %s38
      %p40 = scmp.eq.s32.totalorder %s39, 0
      %s42 = sadd.s32 %s41, 1
      %s43 = scalar_select %p40, %s41, %s42
      %p46 = pneg %p40
      %p47 = scmp.eq.s32.totalorder %s19, 1
      %p48 = por %p46, %p47
      %p49 = scmp.ne.s32.totalorder %s41, %s44
      %p50 = scmp.eq.s32.totalorder %s19, 0
      %p51 = por %p49, %p50
      %p52 = scmp.ne.s32.totalorder %s41, %s44
      %p53 = scmp.eq.s32.totalorder %s24, 1
      %p54 = por %p52, %p53
      %p55 = scmp.ne.s32.totalorder %s44, %s45
      %p56 = scmp.eq.s32.totalorder %s24, 0
      %p57 = por %p55, %p56
      %p58 = scmp.ne.s32.totalorder %s44, %s45
      %p59 = scmp.eq.s32.totalorder %s25, 1
      %p60 = por %p58, %p59
      %p62 = scmp.ne.s32.totalorder %s45, %s61
      %p63 = scmp.eq.s32.totalorder %s25, 0
      %p64 = por %p62, %p63
      %s65 = ssub.s32 %s26, %s38
      %p66 = scmp.eq.s32.totalorder %s65, 0
      %s68 = sadd.s32 %s67, 1
      %s69 = scalar_select %p66, %s67, %s68
      %p72 = pneg %p66
      %p73 = scmp.eq.s32.totalorder %s19, 1
      %p74 = por %p72, %p73
      %p75 = scmp.ne.s32.totalorder %s67, %s70
      %p76 = scmp.eq.s32.totalorder %s19, 0
      %p77 = por %p75, %p76
      %p78 = scmp.ne.s32.totalorder %s67, %s70
      %p79 = scmp.eq.s32.totalorder %s24, 1
      %p80 = por %p78, %p79
      %p81 = scmp.ne.s32.totalorder %s70, %s71
      %p82 = scmp.eq.s32.totalorder %s24, 0
      %p83 = por %p81, %p82
      %p84 = scmp.ne.s32.totalorder %s70, %s71
      %p85 = scmp.eq.s32.totalorder %s25, 1
      %p86 = por %p84, %p85
      %p88 = scmp.ne.s32.totalorder %s71, %s87
      %p89 = scmp.eq.s32.totalorder %s25, 0
      %p90 = por %p88, %p89
      %s91 = ssub.s32 %s26, %s38
      %s92 = ssub.s32 %s27, %s34
      %s93 = sor.u32 %s91, %s92
      %p94 = scmp.eq.s32.totalorder %s93, 0
      %s96 = sadd.s32 %s95, 1
      %s97 = scalar_select %p94, %s95, %s96
      %p100 = pneg %p94
      %p101 = scmp.eq.s32.totalorder %s19, 1
      %p102 = por %p100, %p101
      %p103 = scmp.ne.s32.totalorder %s95, %s98
      %p104 = scmp.eq.s32.totalorder %s19, 0
      %p105 = por %p103, %p104
      %p106 = scmp.ne.s32.totalorder %s95, %s98
      %p107 = scmp.eq.s32.totalorder %s24, 1
      %p108 = por %p106, %p107
      %p109 = scmp.ne.s32.totalorder %s98, %s99
      %p110 = scmp.eq.s32.totalorder %s24, 0
      %p111 = por %p109, %p110
      %p112 = scmp.ne.s32.totalorder %s98, %s99
      %p113 = scmp.eq.s32.totalorder %s25, 1
      %p114 = por %p112, %p113
      %p116 = scmp.ne.s32.totalorder %s99, %s115
      %p117 = scmp.eq.s32.totalorder %s25, 0
      %p118 = por %p116, %p117
      %s119 = ssub.s32 %s26, %s38
      %s120 = ssub.s32 %s27, %s34
      %s121 = sor.u32 %s119, %s120
      %p122 = scmp.eq.s32.totalorder %s121, 0
      %s124 = sadd.s32 %s123, 1
      %s125 = scalar_select %p122, %s123, %s124
      %p128 = pneg %p122
      %p129 = scmp.eq.s32.totalorder %s19, 1
      %p130 = por %p128, %p129
      %p131 = scmp.ne.s32.totalorder %s123, %s126
      %p132 = scmp.eq.s32.totalorder %s19, 0
      %p133 = por %p131, %p132
      %p134 = scmp.ne.s32.totalorder %s123, %s126
      %p135 = scmp.eq.s32.totalorder %s24, 1
      %p136 = por %p134, %p135
      %p137 = scmp.ne.s32.totalorder %s126, %s127
      %p138 = scmp.eq.s32.totalorder %s24, 0
      %p139 = por %p137, %p138
      %p140 = scmp.ne.s32.totalorder %s126, %s127
      %p141 = scmp.eq.s32.totalorder %s25, 1
      %p142 = por %p140, %p141
      %p144 = scmp.ne.s32.totalorder %s127, %s143
      %p145 = scmp.eq.s32.totalorder %s25, 0
      %p146 = por %p144, %p145
      %s147 = ssub.s32 %s26, %s38
      %s148 = ssub.s32 %s27, %s34
      %s149 = sor.u32 %s147, %s148
      %p150 = scmp.eq.s32.totalorder %s149, 0
      %s152 = sadd.s32 %s151, 1
      %s153 = scalar_select %p150, %s151, %s152
      %p156 = pneg %p150
      %p157 = scmp.eq.s32.totalorder %s19, 1
      %p158 = por %p156, %p157
      %p159 = scmp.ne.s32.totalorder %s151, %s154
      %p160 = scmp.eq.s32.totalorder %s19, 0
      %p161 = por %p159, %p160
      %p162 = scmp.ne.s32.totalorder %s151, %s154
      %p163 = scmp.eq.s32.totalorder %s24, 1
      %p164 = por %p162, %p163
      %p165 = scmp.ne.s32.totalorder %s154, %s155
      %p166 = scmp.eq.s32.totalorder %s24, 0
      %p167 = por %p165, %p166
      %p168 = scmp.ne.s32.totalorder %s154, %s155
      %p169 = scmp.eq.s32.totalorder %s25, 1
      %p170 = por %p168, %p169
      %p172 = scmp.ne.s32.totalorder %s155, %s171
      %p173 = scmp.eq.s32.totalorder %s25, 0
      %p174 = por %p172, %p173
      %p175 = scmp.le.s32.totalorder 1, %s19
      %p176 = scmp.lt.s32.totalorder %s19, 3
      %p177 = pnand %p175, %p176
      %p178 = pneg %p177
      // Predicated region
      $region9: #{tpu_custom_call.1} parent=5 // pred_check
        _
      $region10: #{tpu_custom_call.1} parent=5 // pred_check_branch
        %180 = sbr.rel (%p177) target = $region12
      $region11: #{tpu_custom_call.1} parent=5 // pred_region
        %s181 = ssub.s32 %s19, 1
        // Predicated region
        $region13: #{tpu_custom_call.1} parent=11 // pred_check
          %p182 = pneg %p57
        $region14: #{tpu_custom_call.1} parent=11 // pred_check_branch
          %184 = sbr.rel (%p182) target = $region16
        $region15: #{tpu_custom_call.1} parent=11 // pred_region
          %p185 = scmp.lt.s32.totalorder %s28, 0
          %s186 = scalar_select %p185, %s28, 0
          %s187 = smul.addr %s186, 2
          %s188 = scalar_lea.vmem %s0, %s187
        $region16: #{tpu_custom_call.1} parent=11 // pred_fallthru
          _
        // Predicated region
        $region17: #{tpu_custom_call.1} parent=11 // pred_check
          %p189 = pneg %p83
        $region18: #{tpu_custom_call.1} parent=11 // pred_check_branch
          %191 = sbr.rel (%p189) target = $region20
        $region19: #{tpu_custom_call.1} parent=11 // pred_region
          %p192 = scmp.lt.s32.totalorder %s28, 0
          %s193 = scalar_select %p192, %s28, 0
          %s194 = smul.addr %s193, 2
          %s195 = scalar_lea.vmem %s1, %s194
        $region20: #{tpu_custom_call.1} parent=11 // pred_fallthru
          _
      $region12: #{tpu_custom_call.1} parent=5 // pred_fallthru
        _
      %p196 = scmp.lt.s32.totalorder %s19, 2
      // Predicated region
      $region21: #{tpu_custom_call.1} parent=5 // pred_check
        %p197 = pneg %p196
      $region22: #{tpu_custom_call.1} parent=5 // pred_check_branch
        %199 = sbr.rel (%p197) target = $region24
      $region23: #{tpu_custom_call.1} parent=5 // pred_region
        // Predicated region
        $region25: #{tpu_custom_call.1} parent=23 // pred_check
          %p200 = pneg %p105
        $region26: #{tpu_custom_call.1} parent=23 // pred_check_branch
          %202 = sbr.rel (%p200) target = $region28
        $region27: #{tpu_custom_call.1} parent=23 // pred_region
          %s203 = sand.u32 %s95, 1
          %s204 = scalar_lea.sflag [#allocation3], %s203
          %s205 = sand.u32 %s95, 1
          %s206 = smul.addr %s205, 8
          %s207 = scalar_lea.vmem [#allocation2], %s206
          %s208 = smul.u32 4, %s27
          %210 = vsyncadd %s204, 0
          %s211 = smul.addr %s26, 8
          %s212 = sadd.s32 %s208, %s211
          %s213 = smul.addr %s212, 2
          %s214 = scalar_lea.hbm %s2, %s213
          %s216 = sshll.u32 %s214, 4
          %s217 = int_to_ptr.hbm [resolvable:$true] %s216
          %s218 = sshll.u32 %s207, 4
          %s219 = int_to_ptr.vmem [resolvable:$true] %s218
          %221 = dma.hbm_to_vmem [thread:$0]  %s217, 128, %s219, %s204
        $region28: #{tpu_custom_call.1} parent=23 // pred_fallthru
          _
        // Predicated region
        $region29: #{tpu_custom_call.1} parent=23 // pred_check
          %p222 = pneg %p133
        $region30: #{tpu_custom_call.1} parent=23 // pred_check_branch
          %224 = sbr.rel (%p222) target = $region32
        $region31: #{tpu_custom_call.1} parent=23 // pred_region
          %s225 = sand.u32 %s123, 1
          %s226 = scalar_lea.sflag [#allocation6], %s225
          %s227 = sand.u32 %s123, 1
          %s228 = smul.addr %s227, 8
          %s229 = scalar_lea.vmem [#allocation5], %s228
          %s230 = smul.u32 4, %s27
          %232 = vsyncadd %s226, 0
          %s233 = smul.addr %s26, 8
          %s234 = sadd.s32 %s230, %s233
          %s235 = smul.addr %s234, 2
          %s236 = scalar_lea.hbm %s3, %s235
          %s238 = sshll.u32 %s236, 4
          %s239 = int_to_ptr.hbm [resolvable:$true] %s238
          %s240 = sshll.u32 %s229, 4
          %s241 = int_to_ptr.vmem [resolvable:$true] %s240
          %243 = dma.hbm_to_vmem [thread:$0]  %s239, 128, %s241, %s226
        $region32: #{tpu_custom_call.1} parent=23 // pred_fallthru
          _
      $region24: #{tpu_custom_call.1} parent=5 // pred_fallthru
        _
      %p244 = scmp.le.s32.totalorder 1, %s19
      %p245 = scmp.lt.s32.totalorder %s19, 3
      %p246 = pnand %p244, %p245
      %p247 = pneg %p246
      // Predicated region
      $region33: #{tpu_custom_call.1} parent=5 // pred_check
        _
      $region34: #{tpu_custom_call.1} parent=5 // pred_check_branch
        %249 = sbr.rel (%p246) target = $region36
      $region35: #{tpu_custom_call.1} parent=5 // pred_region
        %s250 = ssub.s32 %s19, 1
        %s251 = sand.u32 %s98, 1
        %s252 = scalar_lea.sflag [#allocation3], %s251
        %s253 = sand.u32 %s98, 1
        %s254 = smul.addr %s253, 8
        %s255 = scalar_lea.vmem [#allocation2], %s254
        // Predicated region
        $region37: #{tpu_custom_call.1} parent=35 // pred_check
          %p256 = pneg %p111
        $region38: #{tpu_custom_call.1} parent=35 // pred_check_branch
          %258 = sbr.rel (%p256) target = $region40
        $region39: #{tpu_custom_call.1} parent=35 // pred_region
          %260 = dma.done %s252, 128
        $region40: #{tpu_custom_call.1} parent=35 // pred_fallthru
          _
        %s261 = sand.u32 %s126, 1
        %s262 = scalar_lea.sflag [#allocation6], %s261
        %s263 = sand.u32 %s126, 1
        %s264 = smul.addr %s263, 8
        %s265 = scalar_lea.vmem [#allocation5], %s264
        // Predicated region
        $region41: #{tpu_custom_call.1} parent=35 // pred_check
          %p266 = pneg %p139
        $region42: #{tpu_custom_call.1} parent=35 // pred_check_branch
          %268 = sbr.rel (%p266) target = $region44
        $region43: #{tpu_custom_call.1} parent=35 // pred_region
          %270 = dma.done %s262, 128
        $region44: #{tpu_custom_call.1} parent=35 // pred_fallthru
          _
        %p271 = scmp.lt.s32.totalorder %s28, 0
        %s272 = scalar_select %p271, %s28, 0
        %s273 = smul.addr %s272, 2
        %s274 = scalar_lea.vmem %s0, %s273
        %p275 = pneg %p57
        %p276 = pneg %p54
        %p277 = scmp.lt.s32.totalorder %s28, 0
        %s278 = scalar_select %p277, %s28, 0
        %s279 = smul.addr %s278, 2
        %s280 = scalar_lea.vmem %s1, %s279
        %p281 = pneg %p83
        %p282 = pneg %p80
        %s283 = sand.u32 %s98, 1
        %s284 = scalar_lea.sflag [#allocation3], %s283
        %s285 = sand.u32 %s98, 1
        %s286 = smul.addr %s285, 8
        %s287 = scalar_lea.vmem [#allocation2], %s286
        %p288 = pneg %p111
        %p289 = pneg %p108
        %s290 = sand.u32 %s126, 1
        %s291 = scalar_lea.sflag [#allocation6], %s290
        %s292 = sand.u32 %s126, 1
        %s293 = smul.addr %s292, 8
        %s294 = scalar_lea.vmem [#allocation5], %s293
        %p295 = pneg %p139
        %p296 = pneg %p136
        %p297 = pneg %p167
        %p298 = pneg %p164
        %s299 = sand.u32 %s154, 1
        %s300 = scalar_lea.sflag [#allocation4], %s299
        %s301 = sand.u32 %s154, 1
        %s302 = smul.addr %s301, 8
        %s303 = scalar_lea.vmem [#allocation7], %s302
        %p304 = scmp.lt.s32.totalorder %s28, 0
        %s305 = scalar_select %p304, %s28, 0
        %s306 = smul.addr %s305, 2
        %s307 = scalar_lea.vmem %s0, %s306
        %p308 = scmp.lt.s32.totalorder %s28, 0
        %s309 = scalar_select %p308, %s28, 0
        %s310 = smul.addr %s309, 2
        %s311 = scalar_lea.vmem %s1, %s310
        %s312 = smul.u32 4, %s29
        %s313 = smul.u32 4, %s29
        %s314 = smul.u32 4, %s29
        %v315 = vld [vmem:[%s307] sm:$0x3]
        %v316 = vld [vmem:[%s311] sm:$0x3]
        %v317 = vld [vmem:[%s255] sm:$0xff]
        %v318 = vld [vmem:[%s265] sm:$0xff]
        %320 = vset.pattern.permute.xlu0 0
        %321 = vperm.xlu0 %320, %v315
        %v322 = vpop.permute.xlu0 %321
        %325 = vst [vmem:[#allocation1] ss:$4 sm:$0xff] %v317
        %v326 = vld.sshfl [vmem:[#allocation1] sm:$0xff pattern:$0x73625140]
        %v327 = vld.sshfl [vmem:[#allocation1 + $0x8] sm:$0xff pattern:$0x73625140]
        %v328 = vld.sshfl [vmem:[#allocation1 + $0x10] sm:$0xff pattern:$0x73625140]
        %v329 = vld.sshfl [vmem:[#allocation1 + $0x18] sm:$0xff pattern:$0x73625140]
        %v334 = vmul.f32 %v322, %v326
        %v335 = vmul.f32 %v322, %v327
        %v336 = vmul.f32 %v322, %v328
        %v337 = vmul.f32 %v322, %v329
        %339 = vset.pattern.permute.xlu0 0
        %340 = vperm.xlu0 %339, %v316
        %v341 = vpop.permute.xlu0 %340
        %344 = vst [vmem:[#allocation1] ss:$4 sm:$0xff] %v318
        %v345 = vld.sshfl [vmem:[#allocation1] sm:$0xff pattern:$0x73625140]
        %v346 = vld.sshfl [vmem:[#allocation1 + $0x8] sm:$0xff pattern:$0x73625140]
        %v347 = vld.sshfl [vmem:[#allocation1 + $0x10] sm:$0xff pattern:$0x73625140]
        %v348 = vld.sshfl [vmem:[#allocation1 + $0x18] sm:$0xff pattern:$0x73625140]
        %v353 = vmul.f32 %v341, %v345
        %v354 = vmul.f32 %v341, %v346
        %v355 = vmul.f32 %v341, %v347
        %v356 = vmul.f32 %v341, %v348
        %v357 = vadd.f32 %v334, %v353
        %v358 = vadd.f32 %v335, %v354
        %v359 = vadd.f32 %v336, %v355
        %v360 = vadd.f32 %v337, %v356
        %v365 = vrot.slane %v358, 6
        %v366 = vrot.slane %v359, 4
        %v367 = vrot.slane %v360, 2
        %vm368 = vcmask 1041408
        %v369 = vsel %vm368, %v357, %v365
        %vm370 = vcmask 1045508
        %v371 = vsel %vm370, %v366, %v367
        %vm372 = vcmask 1043456
        %v373 = vsel %vm372, %v369, %v371
        %375 = vst [vmem:[%s303] sm:$0xff] %v373
        %s376 = sand.u32 %s154, 1
        %s377 = scalar_lea.sflag [#allocation4], %s376
        %s378 = sand.u32 %s154, 1
        %s379 = smul.addr %s378, 8
        %s380 = scalar_lea.vmem [#allocation7], %s379
        // Predicated region
        $region45: #{tpu_custom_call.1} parent=35 // pred_check
          %p381 = pneg %p164
        $region46: #{tpu_custom_call.1} parent=35 // pred_check_branch
          %383 = sbr.rel (%p381) target = $region48
        $region47: #{tpu_custom_call.1} parent=35 // pred_region
          %s384 = smul.u32 4, %s29
          %386 = vsyncadd %s377, 0
          %s387 = smul.addr %s28, 8
          %s388 = sadd.s32 %s384, %s387
          %s389 = smul.addr %s388, 2
          %s390 = scalar_lea.hbm %s4, %s389
          %s392 = sshll.u32 %s380, 4
          %s393 = int_to_ptr.vmem [resolvable:$true] %s392
          %s394 = sshll.u32 %s390, 4
          %s395 = int_to_ptr.hbm [resolvable:$true] %s394
          %397 = dma.vmem_to_hbm [thread:$0]  %s393, 128, %s395, %s377
        $region48: #{tpu_custom_call.1} parent=35 // pred_fallthru
          _
      $region36: #{tpu_custom_call.1} parent=5 // pred_fallthru
        _
      %p398 = scmp.le.s32.totalorder 2, %s19
      // Predicated region
      $region49: #{tpu_custom_call.1} parent=5 // pred_check
        %p399 = pneg %p398
      $region50: #{tpu_custom_call.1} parent=5 // pred_check_branch
        %401 = sbr.rel (%p399) target = $region52
      $region51: #{tpu_custom_call.1} parent=5 // pred_region
        %s402 = ssub.s32 %s19, 2
        // Predicated region
        $region53: #{tpu_custom_call.1} parent=51 // pred_check
          %p403 = pneg %p170
        $region54: #{tpu_custom_call.1} parent=51 // pred_check_branch
          %405 = sbr.rel (%p403) target = $region56
        $region55: #{tpu_custom_call.1} parent=51 // pred_region
          %s406 = sand.u32 %s155, 1
          %s407 = scalar_lea.sflag [#allocation4], %s406
          %s408 = sand.u32 %s155, 1
          %s409 = smul.addr %s408, 8
          %s410 = scalar_lea.vmem [#allocation7], %s409
          %412 = dma.done %s407, 128
        $region56: #{tpu_custom_call.1} parent=51 // pred_fallthru
          _
      $region52: #{tpu_custom_call.1} parent=5 // pred_fallthru
        _
    $region6: #{tpu_custom_call.1} parent=1 // loop_footer
      %s23 = sadd.s32 1, %s19
    $region7: #{tpu_custom_call.1} parent=1 // loop_footer_branch
      %18 = sbr.rel target = $region3
    $region8: #{tpu_custom_call.1} parent=1 // loop_exit
      _
    %413 = vsyncpa [#allocation3], 1
    %s414 = scalar_lea.sflag [#allocation3], 1
    %415 = vsyncpa %s414, 1
    %416 = vsyncpa [#allocation6], 1
    %s417 = scalar_lea.sflag [#allocation6], 1
    %418 = vsyncpa %s417, 1
    %419 = vsyncpa [#allocation4], 1
    %s420 = scalar_lea.sflag [#allocation4], 1
    %421 = vsyncpa %s420, 1

</llo_original>
